<compile_context>
chip_gen: v7x
topology: tpu7x:2x2x1
jax: 0.10.0
libtpu: 0.0.40
codegen_flags: <defaults>
</compile_context>

<pallas_src>
import functools

import numpy as np

import jax
import jax.numpy as jnp
from jax.experimental import pallas as pl
from jax.experimental.pallas import tpu as pltpu


def _node_conv_kernel(prev_ref, inp_ref, w_ref, b_ref, m_ref, o_ref,
                      stack_ref, *, H, W, C):
    """Per-batch-sample Node forward: relu(BN(conv3x3(prev+inp))) + prev.

    prev_ref, inp_ref, o_ref : (C, H*W)   lane-dense channel x pixel slabs
    w_ref                    : (C, 9*C)   BN-scale-folded conv weight (tap-major K)
    b_ref                    : (C, 1)     folded BN bias (lane-broadcast add)
    m_ref                    : (4, H*W)   static 0/1 border masks
                                          rows: [x>=1, x<=W-2, y>=1, y<=H-2]
    stack_ref                : (9*C, H*W) VMEM scratch: im2col patch stack
    """
    HW = H * W
    x = prev_ref[...] + inp_ref[...]                  # op(prev + input)

    mx_l = m_ref[0:1, :]      # source column >= 1    (dx = -1)
    mx_r = m_ref[1:2, :]      # source column <= W-2  (dx = +1)
    my_t = m_ref[2:3, :]      # source row    >= 1    (dy = -1)
    my_b = m_ref[3:4, :]      # source row    <= H-2  (dy = +1)

    # dx shifts first (2 XLU rolls); x-border mask applied once here — it is
    # invariant under the subsequent whole-row (dy) shifts.
    xs = {
        -1: pltpu.roll(x, 1, axis=1) * mx_l,          # piece[p] = x[p - 1]
        0: x,
        1: pltpu.roll(x, HW - 1, axis=1) * mx_r,      # piece[p] = x[p + 1]
    }

    # dy shifts (6 more rolls) + y-border mask; store each piece straight into
    # the patch-stack scratch (no concatenate / staging copy).
    for dy, ymask in ((-1, my_t), (0, None), (1, my_b)):
        for dx in (-1, 0, 1):
            piece = xs[dx]
            if dy != 0:
                piece = pltpu.roll(piece, (-dy * W) % HW, axis=1) * ymask
            tap = (dy + 1) * 3 + (dx + 1)             # matches OIHW tap order
            stack_ref[tap * C:(tap + 1) * C, :] = piece

    # One MXU matmul: (C, 9C) @ (9C, HW) -> lane-dense (C, HW).
    conv = jnp.dot(w_ref[...], stack_ref[...],
                   preferred_element_type=jnp.float32)

    # BN bias + ReLU, then skip connection (sc=True).
    o_ref[...] = (jnp.maximum(conv + b_ref[...], 0.0)
                  + prev_ref[...]).astype(o_ref.dtype)


def make_node_params(w_oihw, gamma, beta, run_mean, run_var, H, W, eps=1e-5):
    """One-time (init-time) prep, hoisted out of the per-call hot path.

    Returns (w2d, bias2d, masks):
      w2d    : (C, 9*C)  w2d[co, tap*C + ci] = (w * bn_scale)[co, ci, tap]
      bias2d : (C, 1)    beta - running_mean * bn_scale
      masks  : (4, H*W)  static 0/1 border masks
    """
    C = w_oihw.shape[0]
    scale = gamma / jnp.sqrt(run_var + eps)                       # (C,)
    bias = beta - run_mean * scale                                # (C,)
    w_eff = w_oihw.astype(jnp.float32) * scale[:, None, None, None]
    w2d = w_eff.reshape(C, C, 9).transpose(0, 2, 1).reshape(C, 9 * C)
    bias2d = bias.reshape(C, 1).astype(jnp.float32)

    col = np.arange(H * W) % W
    row = np.arange(H * W) // W
    masks = np.stack([col >= 1, col <= W - 2,
                      row >= 1, row <= H - 2]).astype(np.float32)  # (4, HW)
    return jnp.asarray(w2d), bias2d, jnp.asarray(masks)


@jax.jit
def node_forward(prev_nchw, input_nchw, w2d, bias2d, masks):
    """Node(op='conv', prev=True, input=True, sc=True) forward.

    prev_nchw, input_nchw : (N, C, H, W) float32 (PyTorch layout)
    w2d, bias2d, masks    : outputs of make_node_params (precomputed once)
    returns               : (N, C, H, W) float32
    """
    N, C, H, W = prev_nchw.shape
    HW = H * W

    # Zero-cost reshapes: native NCHW -> (N, C, H*W), lane-dense last dim.
    prev3d = prev_nchw.reshape(N, C, HW).astype(jnp.float32)
    inp3d = input_nchw.reshape(N, C, HW).astype(jnp.float32)

    grid_spec = pltpu.PrefetchScalarGridSpec(
        num_scalar_prefetch=0,
        grid=(N,),  # independent batch samples -> shard across v7x TCs
        in_specs=[
            pl.BlockSpec((None, C, HW), lambda n: (n, 0, 0)),   # prev
            pl.BlockSpec((None, C, HW), lambda n: (n, 0, 0)),   # input
            pl.BlockSpec((C, 9 * C), lambda n: (0, 0)),         # weight (resident)
            pl.BlockSpec((C, 1), lambda n: (0, 0)),             # bias   (resident)
            pl.BlockSpec((4, HW), lambda n: (0, 0)),            # masks  (resident)
        ],
        out_specs=pl.BlockSpec((None, C, HW), lambda n: (n, 0, 0)),
        scratch_shapes=[pltpu.VMEM((9 * C, HW), jnp.float32)],  # patch stack
    )

    out3d = pl.pallas_call(
        functools.partial(_node_conv_kernel, H=H, W=W, C=C),
        out_shape=jax.ShapeDtypeStruct((N, C, HW), jnp.float32),
        grid_spec=grid_spec,
        compiler_params=pltpu.CompilerParams(
            dimension_semantics=("parallel",)),
    )(prev3d, inp3d, w2d, bias2d, masks)

    return out3d.reshape(N, C, H, W)                              # back to NCHW


def _reference(prev_nchw, input_nchw, w_oihw, gamma, beta, run_mean, run_var,
               eps=1e-5):
    """Pure-JAX reference (mirrors the PyTorch module)."""
    x = jnp.transpose(prev_nchw + input_nchw, (0, 2, 3, 1))   # NHWC
    w = jnp.transpose(w_oihw, (2, 3, 1, 0))                   # HWIO
    y = jax.lax.conv_general_dilated(
        x, w, window_strides=(1, 1), padding="SAME",
        dimension_numbers=("NHWC", "HWIO", "NHWC"))
    scale = gamma / jnp.sqrt(run_var + eps)
    y = y * scale + (beta - run_mean * scale)
    y = jnp.maximum(y, 0.0)
    y = y + jnp.transpose(prev_nchw, (0, 2, 3, 1))
    return jnp.transpose(y, (0, 3, 1, 2))


if __name__ == "__main__":
    N, C, H, W = 2, 4, 16, 16

    key = jax.random.PRNGKey(0)
    k_prev, k_inp, k_w, k_g, k_b, k_m, k_v = jax.random.split(key, 7)

    prev = jax.random.normal(k_prev, (N, C, H, W), jnp.float32)
    inp = jax.random.normal(k_inp, (N, C, H, W), jnp.float32)

    # Deterministic parameter init (Conv2d weight + BatchNorm2d params/stats).
    w_oihw = jax.random.normal(k_w, (C, C, 3, 3), jnp.float32) * 0.1
    gamma = 1.0 + 0.1 * jax.random.normal(k_g, (C,), jnp.float32)
    beta = 0.1 * jax.random.normal(k_b, (C,), jnp.float32)
    run_mean = 0.1 * jax.random.normal(k_m, (C,), jnp.float32)
    run_var = 1.0 + 0.5 * jax.random.uniform(k_v, (C,), jnp.float32)

    # One-time weight/mask prep (hoisted out of the per-call hot path).
    w2d, bias2d, masks = make_node_params(w_oihw, gamma, beta, run_mean,
                                          run_var, H, W)

    out = node_forward(prev, inp, w2d, bias2d, masks)
    out = jax.block_until_ready(out)

    ref = _reference(prev, inp, w_oihw, gamma, beta, run_mean, run_var)
    assert out.shape == (N, C, H, W)
    assert jnp.max(jnp.abs(out - ref)) < 1e-4, "mismatch vs reference"

    print("KERNEL_OK")
</pallas_src>

<mosaic_0001>
module attributes {stable_mosaic.version = 11 : i64} {
  func.func @_node_conv_kernel(%arg0: i32, %arg1: memref<1x4x256xf32, #tpu.memory_space<vmem>>, %arg2: memref<1x4x256xf32, #tpu.memory_space<vmem>>, %arg3: memref<4x36xf32, #tpu.memory_space<vmem>>, %arg4: memref<4x1xf32, #tpu.memory_space<vmem>>, %arg5: memref<4x256xf32, #tpu.memory_space<vmem>>, %arg6: memref<1x4x256xf32, #tpu.memory_space<vmem>>, %arg7: memref<36x256xf32, #tpu.memory_space<vmem>>) attributes {dimension_semantics = [#tpu.dimension_semantics<parallel>], iteration_bounds = array<i64: 2>, scalar_prefetch = 0 : i64, scratch_operands = 1 : i64, tpu.core_type = #tpu.core_type<tc>, window_params = [{transform_indices = @transform_0, window_bounds = array<i64: 1, 4, 256>}, {transform_indices = @transform_1, window_bounds = array<i64: 1, 4, 256>}, {pipeline_mode = #tpu.pipeline_mode<synchronous>, transform_indices = @transform_2, window_bounds = array<i64: 4, 36>}, {pipeline_mode = #tpu.pipeline_mode<synchronous>, transform_indices = @transform_3, window_bounds = array<i64: 4, 1>}, {pipeline_mode = #tpu.pipeline_mode<synchronous>, transform_indices = @transform_4, window_bounds = array<i64: 4, 256>}, {transform_indices = @transform_5, window_bounds = array<i64: 1, 4, 256>}]} {
    %c0 = arith.constant 0 : index
    %c0_0 = arith.constant 0 : index
    %c0_1 = arith.constant 0 : index
    %0 = vector.load %arg1[%c0, %c0_0, %c0_1] : memref<1x4x256xf32, #tpu.memory_space<vmem>>, vector<1x4x256xf32>
    %1 = vector.shape_cast %0 : vector<1x4x256xf32> to vector<4x256xf32>
    %c0_2 = arith.constant 0 : index
    %c0_3 = arith.constant 0 : index
    %c0_4 = arith.constant 0 : index
    %2 = vector.load %arg2[%c0_2, %c0_3, %c0_4] : memref<1x4x256xf32, #tpu.memory_space<vmem>>, vector<1x4x256xf32>
    %3 = vector.shape_cast %2 : vector<1x4x256xf32> to vector<4x256xf32>
    %4 = arith.addf %1, %3 : vector<4x256xf32>
    %c0_5 = arith.constant 0 : index
    %c0_6 = arith.constant 0 : index
    %5 = vector.load %arg5[%c0_5, %c0_6] : memref<4x256xf32, #tpu.memory_space<vmem>>, vector<1x256xf32>
    %c1 = arith.constant 1 : index
    %c0_7 = arith.constant 0 : index
    %6 = vector.load %arg5[%c1, %c0_7] : memref<4x256xf32, #tpu.memory_space<vmem>>, vector<1x256xf32>
    %c2 = arith.constant 2 : index
    %c0_8 = arith.constant 0 : index
    %7 = vector.load %arg5[%c2, %c0_8] : memref<4x256xf32, #tpu.memory_space<vmem>>, vector<1x256xf32>
    %c3 = arith.constant 3 : index
    %c0_9 = arith.constant 0 : index
    %8 = vector.load %arg5[%c3, %c0_9] : memref<4x256xf32, #tpu.memory_space<vmem>>, vector<1x256xf32>
    %c1_i32 = arith.constant 1 : i32
    %9 = tpu.dynamic_rotate %4 by %c1_i32 dim 1 : vector<4x256xf32>, i32 -> vector<4x256xf32>
    %10 = vector.broadcast %5 : vector<1x256xf32> to vector<4x256xf32>
    %11 = arith.mulf %9, %10 : vector<4x256xf32>
    %c255_i32 = arith.constant 255 : i32
    %12 = tpu.dynamic_rotate %4 by %c255_i32 dim 1 : vector<4x256xf32>, i32 -> vector<4x256xf32>
    %13 = vector.broadcast %6 : vector<1x256xf32> to vector<4x256xf32>
    %14 = arith.mulf %12, %13 : vector<4x256xf32>
    %c16_i32 = arith.constant 16 : i32
    %15 = tpu.dynamic_rotate %11 by %c16_i32 dim 1 : vector<4x256xf32>, i32 -> vector<4x256xf32>
    %16 = vector.broadcast %7 : vector<1x256xf32> to vector<4x256xf32>
    %17 = arith.mulf %15, %16 : vector<4x256xf32>
    %c0_10 = arith.constant 0 : index
    %c0_11 = arith.constant 0 : index
    %18 = vector.load %arg7[%c0_10, %c0_11] : memref<36x256xf32, #tpu.memory_space<vmem>>, vector<4x256xf32>
    tpu.vector_store %arg7[%c0_10, %c0_11], %17 {strides = array<i32>} : memref<36x256xf32, #tpu.memory_space<vmem>>, vector<4x256xf32>,
    %c16_i32_12 = arith.constant 16 : i32
    %19 = tpu.dynamic_rotate %4 by %c16_i32_12 dim 1 : vector<4x256xf32>, i32 -> vector<4x256xf32>
    %20 = vector.broadcast %7 : vector<1x256xf32> to vector<4x256xf32>
    %21 = arith.mulf %19, %20 : vector<4x256xf32>
    %c4 = arith.constant 4 : index
    %c0_13 = arith.constant 0 : index
    %22 = vector.load %arg7[%c4, %c0_13] : memref<36x256xf32, #tpu.memory_space<vmem>>, vector<4x256xf32>
    tpu.vector_store %arg7[%c4, %c0_13], %21 {strides = array<i32>} : memref<36x256xf32, #tpu.memory_space<vmem>>, vector<4x256xf32>,
    %c16_i32_14 = arith.constant 16 : i32
    %23 = tpu.dynamic_rotate %14 by %c16_i32_14 dim 1 : vector<4x256xf32>, i32 -> vector<4x256xf32>
    %24 = vector.broadcast %7 : vector<1x256xf32> to vector<4x256xf32>
    %25 = arith.mulf %23, %24 : vector<4x256xf32>
    %c8 = arith.constant 8 : index
    %c0_15 = arith.constant 0 : index
    %26 = vector.load %arg7[%c8, %c0_15] : memref<36x256xf32, #tpu.memory_space<vmem>>, vector<4x256xf32>
    tpu.vector_store %arg7[%c8, %c0_15], %25 {strides = array<i32>} : memref<36x256xf32, #tpu.memory_space<vmem>>, vector<4x256xf32>,
    %c12 = arith.constant 12 : index
    %c0_16 = arith.constant 0 : index
    %27 = vector.load %arg7[%c12, %c0_16] : memref<36x256xf32, #tpu.memory_space<vmem>>, vector<4x256xf32>
    tpu.vector_store %arg7[%c12, %c0_16], %11 {strides = array<i32>} : memref<36x256xf32, #tpu.memory_space<vmem>>, vector<4x256xf32>,
    %c16 = arith.constant 16 : index
    %c0_17 = arith.constant 0 : index
    %28 = vector.load %arg7[%c16, %c0_17] : memref<36x256xf32, #tpu.memory_space<vmem>>, vector<4x256xf32>
    tpu.vector_store %arg7[%c16, %c0_17], %4 {strides = array<i32>} : memref<36x256xf32, #tpu.memory_space<vmem>>, vector<4x256xf32>,
    %c20 = arith.constant 20 : index
    %c0_18 = arith.constant 0 : index
    %29 = vector.load %arg7[%c20, %c0_18] : memref<36x256xf32, #tpu.memory_space<vmem>>, vector<4x256xf32>
    tpu.vector_store %arg7[%c20, %c0_18], %14 {strides = array<i32>} : memref<36x256xf32, #tpu.memory_space<vmem>>, vector<4x256xf32>,
    %c240_i32 = arith.constant 240 : i32
    %30 = tpu.dynamic_rotate %11 by %c240_i32 dim 1 : vector<4x256xf32>, i32 -> vector<4x256xf32>
    %31 = vector.broadcast %8 : vector<1x256xf32> to vector<4x256xf32>
    %32 = arith.mulf %30, %31 : vector<4x256xf32>
    %c24 = arith.constant 24 : index
    %c0_19 = arith.constant 0 : index
    %33 = vector.load %arg7[%c24, %c0_19] : memref<36x256xf32, #tpu.memory_space<vmem>>, vector<4x256xf32>
    tpu.vector_store %arg7[%c24, %c0_19], %32 {strides = array<i32>} : memref<36x256xf32, #tpu.memory_space<vmem>>, vector<4x256xf32>,
    %c240_i32_20 = arith.constant 240 : i32
    %34 = tpu.dynamic_rotate %4 by %c240_i32_20 dim 1 : vector<4x256xf32>, i32 -> vector<4x256xf32>
    %35 = vector.broadcast %8 : vector<1x256xf32> to vector<4x256xf32>
    %36 = arith.mulf %34, %35 : vector<4x256xf32>
    %c28 = arith.constant 28 : index
    %c0_21 = arith.constant 0 : index
    %37 = vector.load %arg7[%c28, %c0_21] : memref<36x256xf32, #tpu.memory_space<vmem>>, vector<4x256xf32>
    tpu.vector_store %arg7[%c28, %c0_21], %36 {strides = array<i32>} : memref<36x256xf32, #tpu.memory_space<vmem>>, vector<4x256xf32>,
    %c240_i32_22 = arith.constant 240 : i32
    %38 = tpu.dynamic_rotate %14 by %c240_i32_22 dim 1 : vector<4x256xf32>, i32 -> vector<4x256xf32>
    %39 = vector.broadcast %8 : vector<1x256xf32> to vector<4x256xf32>
    %40 = arith.mulf %38, %39 : vector<4x256xf32>
    %c32 = arith.constant 32 : index
    %c0_23 = arith.constant 0 : index
    %41 = vector.load %arg7[%c32, %c0_23] : memref<36x256xf32, #tpu.memory_space<vmem>>, vector<4x256xf32>
    tpu.vector_store %arg7[%c32, %c0_23], %40 {strides = array<i32>} : memref<36x256xf32, #tpu.memory_space<vmem>>, vector<4x256xf32>,
    %c0_24 = arith.constant 0 : index
    %c0_25 = arith.constant 0 : index
    %42 = vector.load %arg3[%c0_24, %c0_25] : memref<4x36xf32, #tpu.memory_space<vmem>>, vector<4x36xf32>
    %c0_26 = arith.constant 0 : index
    %c0_27 = arith.constant 0 : index
    %43 = vector.load %arg7[%c0_26, %c0_27] : memref<36x256xf32, #tpu.memory_space<vmem>>, vector<36x256xf32>
    %cst = arith.constant dense<0.000000e+00> : vector<4x256xf32>
    %44 = tpu.matmul %42, %43, %cst {dimension_numbers = #tpu.dot_dimension_numbers<[1], [0], [0], [1], [0, 0, 1, 1], [], []>} : vector<4x36xf32>, vector<36x256xf32>, vector<4x256xf32> -> vector<4x256xf32>
    %c0_28 = arith.constant 0 : index
    %c0_29 = arith.constant 0 : index
    %45 = vector.load %arg4[%c0_28, %c0_29] : memref<4x1xf32, #tpu.memory_space<vmem>>, vector<4x1xf32>
    %46 = vector.broadcast %45 : vector<4x1xf32> to vector<4x256xf32>
    %47 = arith.addf %44, %46 : vector<4x256xf32>
    %cst_30 = arith.constant 0.000000e+00 : f32
    %48 = vector.broadcast %cst_30 : f32 to vector<4x256xf32>
    %49 = arith.maximumf %47, %48 : vector<4x256xf32>
    %c0_31 = arith.constant 0 : index
    %c0_32 = arith.constant 0 : index
    %c0_33 = arith.constant 0 : index
    %50 = vector.load %arg1[%c0_31, %c0_32, %c0_33] : memref<1x4x256xf32, #tpu.memory_space<vmem>>, vector<1x4x256xf32>
    %51 = vector.shape_cast %50 : vector<1x4x256xf32> to vector<4x256xf32>
    %52 = arith.addf %49, %51 : vector<4x256xf32>
    %c0_34 = arith.constant 0 : index
    %c0_35 = arith.constant 0 : index
    %c0_36 = arith.constant 0 : index
    %53 = vector.load %arg6[%c0_34, %c0_35, %c0_36] : memref<1x4x256xf32, #tpu.memory_space<vmem>>, vector<1x4x256xf32>
    %54 = vector.shape_cast %53 : vector<1x4x256xf32> to vector<4x256xf32>
    %55 = vector.shape_cast %52 : vector<4x256xf32> to vector<1x4x256xf32>
    tpu.vector_store %arg6[%c0_34, %c0_35, %c0_36], %55 {strides = array<i32>} : memref<1x4x256xf32, #tpu.memory_space<vmem>>, vector<1x4x256xf32>,
    return
  }
  func.func @transform_0(%arg0: i32) -> (i32, i32, i32) {
    %c0_i32 = arith.constant 0 : i32
    %c0_i32_0 = arith.constant 0 : i32
    %c0_i32_1 = arith.constant 0 : i32
    return %arg0, %c0_i32, %c0_i32_0 : i32, i32, i32
  }
  func.func @transform_1(%arg0: i32) -> (i32, i32, i32) {
    %c0_i32 = arith.constant 0 : i32
    %c0_i32_0 = arith.constant 0 : i32
    %c0_i32_1 = arith.constant 0 : i32
    return %arg0, %c0_i32, %c0_i32_0 : i32, i32, i32
  }
  func.func @transform_2(%arg0: i32) -> (i32, i32) {
    %c0_i32 = arith.constant 0 : i32
    %c0_i32_0 = arith.constant 0 : i32
    %c0_i32_1 = arith.constant 0 : i32
    return %c0_i32, %c0_i32_0 : i32, i32
  }
  func.func @transform_3(%arg0: i32) -> (i32, i32) {
    %c0_i32 = arith.constant 0 : i32
    %c0_i32_0 = arith.constant 0 : i32
    %c0_i32_1 = arith.constant 0 : i32
    return %c0_i32, %c0_i32_0 : i32, i32
  }
  func.func @transform_4(%arg0: i32) -> (i32, i32) {
    %c0_i32 = arith.constant 0 : i32
    %c0_i32_0 = arith.constant 0 : i32
    %c0_i32_1 = arith.constant 0 : i32
    return %c0_i32, %c0_i32_0 : i32, i32
  }
  func.func @transform_5(%arg0: i32) -> (i32, i32, i32) {
    %c0_i32 = arith.constant 0 : i32
    %c0_i32_0 = arith.constant 0 : i32
    %c0_i32_1 = arith.constant 0 : i32
    return %arg0, %c0_i32, %c0_i32_0 : i32, i32, i32
  }
}

</mosaic_0001>

<llo_original>
// kernel: node_forward.1
$region0: #{node_forward.1}
  #allocation0 [shape = 'u32[]', space=smem, size = 0x4, offset = 0x4, fixed_abs, tag = 'smem constant byte address 0x4 - core index']
  #allocation1 [shape = 'u32[144,128]{1,0:T(1,128)}', space=vmem, size = 0x12000, scoped, tag = 'internal scratch']
  #allocation2 [shape = 'f32[36,256]{1,0:T(8,128)}', space=vmem, size = 0xa000, scoped, tag = 'scratch operand']
  %s0 = inlined_call_operand.vmem [shape: f32[2,4,256], index: 0, kind: input, shape index: {}]
  %s1 = inlined_call_operand.vmem [shape: f32[2,4,256], index: 1, kind: input, shape index: {}]
  %s2 = inlined_call_operand.vmem [shape: f32[4,36], index: 2, kind: input, shape index: {}]
  %s3 = inlined_call_operand.vmem [shape: f32[4,1], index: 3, kind: input, shape index: {}]
  %s4 = inlined_call_operand.vmem [shape: f32[4,256], index: 4, kind: input, shape index: {}]
  %s5 = inlined_call_operand.vmem [shape: f32[2,4,256], index: 5, kind: output, shape index: {}]
  %s6 = sld [smem:[#allocation0]]
  $region53: #{node_forward.1} parent=0
    _
  %s8 = ssub.s32 1, %s6
  %s9 = scalar_select 0, %s8, %s6
  loop: start=0, step=1, limit=4
  $region2: #{node_forward.1} parent=0 // loop_pre_header
    _
  $region3: #{node_forward.1} parent=0 // loop_header
    %s11 = sphi 0, %s15
    %p12 = scmp.ge.s32.totalorder %s11, 4
    %s21 = sphi 0, %s23
    %s24 = sphi 0, %s21
    %s25 = sphi 0, %s24
    %s41 = sphi 0, %s25
    %s47 = sphi 0, %s49
    %s50 = sphi 0, %s47
    %s51 = sphi 0, %s50
    %s67 = sphi 0, %s51
    %s71 = sphi 0, %s71
    %s73 = sphi 0, %s71
    %s74 = sphi 0, %s73
    %s88 = sphi 0, %s74
    %s92 = sphi 0, %s92
    %s94 = sphi 0, %s92
    %s95 = sphi 0, %s94
    %s109 = sphi 0, %s95
    %s113 = sphi 0, %s113
    %s115 = sphi 0, %s113
    %s116 = sphi 0, %s115
    %s130 = sphi 0, %s116
    %s136 = sphi 0, %s138
    %s139 = sphi 0, %s136
    %s140 = sphi 0, %s139
    %s156 = sphi 0, %s140
  $region4: #{node_forward.1} parent=0 // loop_header_branch
    %14 = sbr.rel (%p12) target = $region8
  $region5: #{node_forward.1} parent=0 // loop_body
    %s16 = ssub.s32 %s11, 1
    %s17 = ssub.s32 %s11, 2
    %s18 = sadd.s32 %s11, 1
    %s19 = ssub.s32 %s11, %s18
    %p20 = scmp.eq.s32.totalorder %s19, 0
    %s22 = sadd.s32 %s21, 1
    %s23 = scalar_select %p20, %s21, %s22
    %p26 = pneg %p20
    %p27 = scmp.eq.s32.totalorder %s11, 1
    %p28 = por %p26, %p27
    %p29 = scmp.ne.s32.totalorder %s21, %s24
    %p30 = scmp.eq.s32.totalorder %s11, 0
    %p31 = por %p29, %p30
    %p32 = scmp.ne.s32.totalorder %s21, %s24
    %p33 = scmp.eq.s32.totalorder %s16, 1
    %p34 = por %p32, %p33
    %p35 = scmp.ne.s32.totalorder %s24, %s25
    %p36 = scmp.eq.s32.totalorder %s16, 0
    %p37 = por %p35, %p36
    %p38 = scmp.ne.s32.totalorder %s24, %s25
    %p39 = scmp.eq.s32.totalorder %s17, 1
    %p40 = por %p38, %p39
    %p42 = scmp.ne.s32.totalorder %s25, %s41
    %p43 = scmp.eq.s32.totalorder %s17, 0
    %p44 = por %p42, %p43
    %s45 = ssub.s32 %s11, %s18
    %p46 = scmp.eq.s32.totalorder %s45, 0
    %s48 = sadd.s32 %s47, 1
    %s49 = scalar_select %p46, %s47, %s48
    %p52 = pneg %p46
    %p53 = scmp.eq.s32.totalorder %s11, 1
    %p54 = por %p52, %p53
    %p55 = scmp.ne.s32.totalorder %s47, %s50
    %p56 = scmp.eq.s32.totalorder %s11, 0
    %p57 = por %p55, %p56
    %p58 = scmp.ne.s32.totalorder %s47, %s50
    %p59 = scmp.eq.s32.totalorder %s16, 1
    %p60 = por %p58, %p59
    %p61 = scmp.ne.s32.totalorder %s50, %s51
    %p62 = scmp.eq.s32.totalorder %s16, 0
    %p63 = por %p61, %p62
    %p64 = scmp.ne.s32.totalorder %s50, %s51
    %p65 = scmp.eq.s32.totalorder %s17, 1
    %p66 = por %p64, %p65
    %p68 = scmp.ne.s32.totalorder %s51, %s67
    %p69 = scmp.eq.s32.totalorder %s17, 0
    %p70 = por %p68, %p69
    %s72 = sadd.s32 %s71, 1
    %p75 = scmp.eq.s32.totalorder %s11, 1
    %p76 = scmp.ne.s32.totalorder %s71, %s73
    %p77 = scmp.eq.s32.totalorder %s11, 0
    %p78 = por %p76, %p77
    %p79 = scmp.ne.s32.totalorder %s71, %s73
    %p80 = scmp.eq.s32.totalorder %s16, 1
    %p81 = por %p79, %p80
    %p82 = scmp.ne.s32.totalorder %s73, %s74
    %p83 = scmp.eq.s32.totalorder %s16, 0
    %p84 = por %p82, %p83
    %p85 = scmp.ne.s32.totalorder %s73, %s74
    %p86 = scmp.eq.s32.totalorder %s17, 1
    %p87 = por %p85, %p86
    %p89 = scmp.ne.s32.totalorder %s74, %s88
    %p90 = scmp.eq.s32.totalorder %s17, 0
    %p91 = por %p89, %p90
    %s93 = sadd.s32 %s92, 1
    %p96 = scmp.eq.s32.totalorder %s11, 1
    %p97 = scmp.ne.s32.totalorder %s92, %s94
    %p98 = scmp.eq.s32.totalorder %s11, 0
    %p99 = por %p97, %p98
    %p100 = scmp.ne.s32.totalorder %s92, %s94
    %p101 = scmp.eq.s32.totalorder %s16, 1
    %p102 = por %p100, %p101
    %p103 = scmp.ne.s32.totalorder %s94, %s95
    %p104 = scmp.eq.s32.totalorder %s16, 0
    %p105 = por %p103, %p104
    %p106 = scmp.ne.s32.totalorder %s94, %s95
    %p107 = scmp.eq.s32.totalorder %s17, 1
    %p108 = por %p106, %p107
    %p110 = scmp.ne.s32.totalorder %s95, %s109
    %p111 = scmp.eq.s32.totalorder %s17, 0
    %p112 = por %p110, %p111
    %s114 = sadd.s32 %s113, 1
    %p117 = scmp.eq.s32.totalorder %s11, 1
    %p118 = scmp.ne.s32.totalorder %s113, %s115
    %p119 = scmp.eq.s32.totalorder %s11, 0
    %p120 = por %p118, %p119
    %p121 = scmp.ne.s32.totalorder %s113, %s115
    %p122 = scmp.eq.s32.totalorder %s16, 1
    %p123 = por %p121, %p122
    %p124 = scmp.ne.s32.totalorder %s115, %s116
    %p125 = scmp.eq.s32.totalorder %s16, 0
    %p126 = por %p124, %p125
    %p127 = scmp.ne.s32.totalorder %s115, %s116
    %p128 = scmp.eq.s32.totalorder %s17, 1
    %p129 = por %p127, %p128
    %p131 = scmp.ne.s32.totalorder %s116, %s130
    %p132 = scmp.eq.s32.totalorder %s17, 0
    %p133 = por %p131, %p132
    %s134 = ssub.s32 %s11, %s18
    %p135 = scmp.eq.s32.totalorder %s134, 0
    %s137 = sadd.s32 %s136, 1
    %s138 = scalar_select %p135, %s136, %s137
    %p141 = pneg %p135
    %p142 = scmp.eq.s32.totalorder %s11, 1
    %p143 = por %p141, %p142
    %p144 = scmp.ne.s32.totalorder %s136, %s139
    %p145 = scmp.eq.s32.totalorder %s11, 0
    %p146 = por %p144, %p145
    %p147 = scmp.ne.s32.totalorder %s136, %s139
    %p148 = scmp.eq.s32.totalorder %s16, 1
    %p149 = por %p147, %p148
    %p150 = scmp.ne.s32.totalorder %s139, %s140
    %p151 = scmp.eq.s32.totalorder %s16, 0
    %p152 = por %p150, %p151
    %p153 = scmp.ne.s32.totalorder %s139, %s140
    %p154 = scmp.eq.s32.totalorder %s17, 1
    %p155 = por %p153, %p154
    %p157 = scmp.ne.s32.totalorder %s140, %s156
    %p158 = scmp.eq.s32.totalorder %s17, 0
    %p159 = por %p157, %p158
    %p160 = scmp.le.s32.totalorder 1, %s11
    %p161 = scmp.lt.s32.totalorder %s11, 3
    %p162 = pnand %p160, %p161
    %p163 = pneg %p162
    // Predicated region
    $region9: #{node_forward.1} parent=5 // pred_check
      _
    $region10: #{node_forward.1} parent=5 // pred_check_branch
      %165 = sbr.rel (%p162) target = $region12
    $region11: #{node_forward.1} parent=5 // pred_region
      %s166 = ssub.s32 %s11, 1
      // Predicated region
      $region13: #{node_forward.1} parent=11 // pred_check
        %p167 = pneg %p84
      $region14: #{node_forward.1} parent=11 // pred_check_branch
        %169 = sbr.rel (%p167) target = $region16
      $region15: #{node_forward.1} parent=11 // pred_region
        _
      $region16: #{node_forward.1} parent=11 // pred_fallthru
        _
      // Predicated region
      $region17: #{node_forward.1} parent=11 // pred_check
        %p170 = pneg %p105
      $region18: #{node_forward.1} parent=11 // pred_check_branch
        %172 = sbr.rel (%p170) target = $region20
      $region19: #{node_forward.1} parent=11 // pred_region
        _
      $region20: #{node_forward.1} parent=11 // pred_fallthru
        _
      // Predicated region
      $region21: #{node_forward.1} parent=11 // pred_check
        %p173 = pneg %p126
      $region22: #{node_forward.1} parent=11 // pred_check_branch
        %175 = sbr.rel (%p173) target = $region24
      $region23: #{node_forward.1} parent=11 // pred_region
        _
      $region24: #{node_forward.1} parent=11 // pred_fallthru
        _
    $region12: #{node_forward.1} parent=5 // pred_fallthru
      _
    %p176 = scmp.lt.s32.totalorder %s11, 2
    // Predicated region
    $region25: #{node_forward.1} parent=5 // pred_check
      %p177 = pneg %p176
    $region26: #{node_forward.1} parent=5 // pred_check_branch
      %179 = sbr.rel (%p177) target = $region28
    $region27: #{node_forward.1} parent=5 // pred_region
      // Predicated region
      $region29: #{node_forward.1} parent=27 // pred_check
        %p180 = pneg %p31
      $region30: #{node_forward.1} parent=27 // pred_check_branch
        %182 = sbr.rel (%p180) target = $region32
      $region31: #{node_forward.1} parent=27 // pred_region
        %p183 = scmp.lt.s32.totalorder %s11, 1
        %s184 = scalar_select %p183, %s11, 1
        %s185 = smul.addr %s184, 2
        %s186 = smul.addr %s185, 4
        %s187 = scalar_lea.vmem %s0, %s186
      $region32: #{node_forward.1} parent=27 // pred_fallthru
        _
      // Predicated region
      $region33: #{node_forward.1} parent=27 // pred_check
        %p188 = pneg %p57
      $region34: #{node_forward.1} parent=27 // pred_check_branch
        %190 = sbr.rel (%p188) target = $region36
      $region35: #{node_forward.1} parent=27 // pred_region
        %p191 = scmp.lt.s32.totalorder %s11, 1
        %s192 = scalar_select %p191, %s11, 1
        %s193 = smul.addr %s192, 2
        %s194 = smul.addr %s193, 4
        %s195 = scalar_lea.vmem %s1, %s194
      $region36: #{node_forward.1} parent=27 // pred_fallthru
        _
    $region28: #{node_forward.1} parent=5 // pred_fallthru
      _
    %p196 = scmp.le.s32.totalorder 1, %s11
    %p197 = scmp.lt.s32.totalorder %s11, 3
    %p198 = pnand %p196, %p197
    %p199 = pneg %p198
    // Predicated region
    $region37: #{node_forward.1} parent=5 // pred_check
      _
    $region38: #{node_forward.1} parent=5 // pred_check_branch
      %201 = sbr.rel (%p198) target = $region40
    $region39: #{node_forward.1} parent=5 // pred_region
      %s202 = ssub.s32 %s11, 1
      %p203 = scmp.lt.s32.totalorder %s16, 1
      %s204 = scalar_select %p203, %s16, 1
      %s205 = smul.addr %s204, 2
      %s206 = smul.addr %s205, 4
      %s207 = scalar_lea.vmem %s0, %s206
      %p208 = pneg %p37
      %p209 = pneg %p34
      %p210 = scmp.lt.s32.totalorder %s16, 1
      %s211 = scalar_select %p210, %s16, 1
      %s212 = smul.addr %s211, 2
      %s213 = smul.addr %s212, 4
      %s214 = scalar_lea.vmem %s1, %s213
      %p215 = pneg %p63
      %p216 = pneg %p60
      %p217 = pneg %p84
      %p218 = pneg %p81
      %p219 = pneg %p105
      %p220 = pneg %p102
      %p221 = pneg %p126
      %p222 = pneg %p123
      %p223 = pneg %p152
      %p224 = pneg %p149
      %p225 = scmp.lt.s32.totalorder %s16, 1
      %s226 = scalar_select %p225, %s16, 1
      %s227 = smul.addr %s226, 2
      %s228 = smul.addr %s227, 4
      %s229 = scalar_lea.vmem %s5, %s228
      %p230 = scmp.lt.s32.totalorder %s16, 1
      %s231 = scalar_select %p230, %s16, 1
      %s232 = smul.addr %s231, 2
      %s233 = smul.addr %s232, 4
      %s234 = scalar_lea.vmem %s0, %s233
      %p235 = scmp.lt.s32.totalorder %s16, 1
      %s236 = scalar_select %p235, %s16, 1
      %s237 = smul.addr %s236, 2
      %s238 = smul.addr %s237, 4
      %s239 = scalar_lea.vmem %s1, %s238
      %p240 = scmp.lt.s32.totalorder %s16, 1
      %s241 = scalar_select %p240, %s16, 1
      %s242 = smul.addr %s241, 2
      %s243 = smul.addr %s242, 4
      %s244 = scalar_lea.vmem %s5, %s243
      %v245 = vld [vmem:[%s234] sm:$0xff]
      %v246 = vld [vmem:[%s239] sm:$0xff]
      %v247 = vadd.f32 %v245, %v246
      %v248 = vld [vmem:[%s4] ss:$4 sm:$0x3]
      %s249 = scalar_lea.vmem %s4, 1
      %v250 = vld [vmem:[%s249] ss:$4 sm:$0x3]
      %s251 = scalar_lea.vmem %s4, 2
      %v252 = vld [vmem:[%s251] ss:$4 sm:$0x3]
      %s253 = scalar_lea.vmem %s4, 3
      %v254 = vld [vmem:[%s253] ss:$4 sm:$0x3]
      %v256 = vcombine.high %v247, %v247
      %258 = vrot.lane.b32.xlu0 %v247, 1
      %v259 = vpop.permute.xlu0 %258
      %260 = vrot.lane.b32.xlu0 %v256, 1
      %v261 = vpop.permute.xlu0 %260
      %v262 = vlaneseq
      %v263 = vand.u32 %v262, 127
      %vm264 = vcmp.lt.s32.totalorder %v263, 1
      %v265 = vsel %vm264, %v259, %v261
      %v266 = vsel %vm264, %v261, %v259
      %v268 = vlaneseq
      %v269 = vshrl.u32 %v268, 7
      %v270 = vsub.s32 0, %v269
      %v271 = vrot.slane %v248, %v270
      %v272 = vlaneseq
      %v273 = vshrl.u32 %v272, 7
      %v274 = vsub.s32 1, %v273
      %v275 = vrot.slane %v248, %v274
      %v278 = vmul.f32 %v266, %v271
      %v279 = vmul.f32 %v265, %v275
      %280 = vrot.lane.b32.xlu0 %v247, 127
      %v281 = vpop.permute.xlu0 %280
      %282 = vrot.lane.b32.xlu0 %v256, 127
      %v283 = vpop.permute.xlu0 %282
      %vm284 = vcmp.lt.s32.totalorder %v263, 127
      %v285 = vsel %vm284, %v281, %v283
      %v286 = vsel %vm284, %v283, %v281
      %v288 = vlaneseq
      %v289 = vshrl.u32 %v288, 7
      %v290 = vsub.s32 0, %v289
      %v291 = vrot.slane %v250, %v290
      %v292 = vlaneseq
      %v293 = vshrl.u32 %v292, 7
      %v294 = vsub.s32 1, %v293
      %v295 = vrot.slane %v250, %v294
      %v298 = vmul.f32 %v285, %v291
      %v299 = vmul.f32 %v286, %v295
      %300 = vrot.lane.b32.xlu0 %v278, 16
      %v301 = vpop.permute.xlu0 %300
      %302 = vrot.lane.b32.xlu0 %v279, 16
      %v303 = vpop.permute.xlu0 %302
      %vm304 = vcmp.lt.s32.totalorder %v263, 16
      %v305 = vsel %vm304, %v301, %v303
      %v306 = vsel %vm304, %v303, %v301
      %v308 = vlaneseq
      %v309 = vshrl.u32 %v308, 7
      %v310 = vsub.s32 0, %v309
      %v311 = vrot.slane %v252, %v310
      %v312 = vlaneseq
      %v313 = vshrl.u32 %v312, 7
      %v314 = vsub.s32 1, %v313
      %v315 = vrot.slane %v252, %v314
      %v318 = vmul.f32 %v306, %v311
      %v319 = vmul.f32 %v305, %v315
      %320 = vst [vmem:[#allocation2] sm:$0xf] %v318
      %321 = vst [vmem:[#allocation2 + $0x8] sm:$0xf] %v319
      %322 = vrot.lane.b32.xlu0 %v247, 16
      %v323 = vpop.permute.xlu0 %322
      %324 = vrot.lane.b32.xlu0 %v256, 16
      %v325 = vpop.permute.xlu0 %324
      %v326 = vsel %vm304, %v323, %v325
      %v327 = vsel %vm304, %v325, %v323
      %v328 = vmul.f32 %v327, %v311
      %v329 = vmul.f32 %v326, %v315
      %v332 = vrot.slane %v328, 4
      %v333 = vrot.slane %v329, 4
      %336 = vst [vmem:[#allocation2] sm:$0xf0] %v332
      %337 = vst [vmem:[#allocation2 + $0x8] sm:$0xf0] %v333
      %338 = vrot.lane.b32.xlu0 %v298, 16
      %v339 = vpop.permute.xlu0 %338
      %340 = vrot.lane.b32.xlu0 %v299, 16
      %v341 = vpop.permute.xlu0 %340
      %v342 = vsel %vm304, %v339, %v341
      %v343 = vsel %vm304, %v341, %v339
      %v344 = vmul.f32 %v343, %v311
      %v345 = vmul.f32 %v342, %v315
      %346 = vst [vmem:[#allocation2 + $0x10] sm:$0xf] %v344
      %347 = vst [vmem:[#allocation2 + $0x18] sm:$0xf] %v345
      %v350 = vrot.slane %v278, 4
      %v351 = vrot.slane %v279, 4
      %354 = vst [vmem:[#allocation2 + $0x10] sm:$0xf0] %v350
      %355 = vst [vmem:[#allocation2 + $0x18] sm:$0xf0] %v351
      %356 = vst [vmem:[#allocation2 + $0x20] sm:$0xf] %v247
      %357 = vst [vmem:[#allocation2 + $0x28] sm:$0xf] %v256
      %v360 = vrot.slane %v298, 4
      %v361 = vrot.slane %v299, 4
      %364 = vst [vmem:[#allocation2 + $0x20] sm:$0xf0] %v360
      %365 = vst [vmem:[#allocation2 + $0x28] sm:$0xf0] %v361
      %366 = vrot.lane.b32.xlu0 %v278, 112
      %v367 = vpop.permute.xlu0 %366
      %368 = vrot.lane.b32.xlu0 %v279, 112
      %v369 = vpop.permute.xlu0 %368
      %vm370 = vcmp.lt.s32.totalorder %v263, 112
      %v371 = vsel %vm370, %v367, %v369
      %v372 = vsel %vm370, %v369, %v367
      %v374 = vlaneseq
      %v375 = vshrl.u32 %v374, 7
      %v376 = vsub.s32 0, %v375
      %v377 = vrot.slane %v254, %v376
      %v378 = vlaneseq
      %v379 = vshrl.u32 %v378, 7
      %v380 = vsub.s32 1, %v379
      %v381 = vrot.slane %v254, %v380
      %v384 = vmul.f32 %v371, %v377
      %v385 = vmul.f32 %v372, %v381
      %386 = vst [vmem:[#allocation2 + $0x30] sm:$0xf] %v384
      %387 = vst [vmem:[#allocation2 + $0x38] sm:$0xf] %v385
      %388 = vrot.lane.b32.xlu0 %v247, 112
      %v389 = vpop.permute.xlu0 %388
      %390 = vrot.lane.b32.xlu0 %v256, 112
      %v391 = vpop.permute.xlu0 %390
      %v392 = vsel %vm370, %v389, %v391
      %v393 = vsel %vm370, %v391, %v389
      %v394 = vmul.f32 %v392, %v377
      %v395 = vmul.f32 %v393, %v381
      %v398 = vrot.slane %v394, 4
      %v399 = vrot.slane %v395, 4
      %402 = vst [vmem:[#allocation2 + $0x30] sm:$0xf0] %v398
      %403 = vst [vmem:[#allocation2 + $0x38] sm:$0xf0] %v399
      %404 = vrot.lane.b32.xlu0 %v298, 112
      %v405 = vpop.permute.xlu0 %404
      %406 = vrot.lane.b32.xlu0 %v299, 112
      %v407 = vpop.permute.xlu0 %406
      %v408 = vsel %vm370, %v405, %v407
      %v409 = vsel %vm370, %v407, %v405
      %v410 = vmul.f32 %v408, %v377
      %v411 = vmul.f32 %v409, %v381
      %412 = vst [vmem:[#allocation2 + $0x40] sm:$0xf] %v410
      %413 = vst [vmem:[#allocation2 + $0x48] sm:$0xf] %v411
      %v414 = vld [vmem:[%s2] sm:$0xf]
      %v415 = vld [vmem:[#allocation2] sm:$0xff]
      %v416 = vld [vmem:[#allocation2 + $0x8] sm:$0xff]
      %v417 = vld [vmem:[#allocation2 + $0x10] sm:$0xff]
      %v418 = vld [vmem:[#allocation2 + $0x18] sm:$0xff]
      %v419 = vld [vmem:[#allocation2 + $0x20] sm:$0xff]
      %v420 = vld [vmem:[#allocation2 + $0x28] sm:$0xff]
      %v421 = vld [vmem:[#allocation2 + $0x30] sm:$0xff]
      %v422 = vld [vmem:[#allocation2 + $0x38] sm:$0xff]
      %v423 = vld [vmem:[#allocation2 + $0x40] sm:$0xf]
      %v424 = vld [vmem:[#allocation2 + $0x48] sm:$0xf]
      %v425 = vld [vmem:[%s3] sm:$0xf]
      %427 = vset.pattern.permute.xlu0 0
      %428 = vperm.xlu0 %427, %v425
      %v429 = vpop.permute.xlu0 %428
      %vm431 = vcmask 293888
      %v433 = vsel %vm431, %v414, 0
      %vm435 = vcmask 1043456
      %v437 = vsel %vm435, %v423, 0
      %v440 = vsel %vm435, %v424, 0
      %442 = vmatprep.subr.mxu0 %v416
      %443 = vmatpush1.msra.mxu0 %v415
      %444 = vmatprep.subr.mxu0 %v418
      %445 = vmatpush1.msra.mxu0 %v417
      %446 = vmatprep.subr.mxu0 %v420
      %447 = vmatpush1.msra.mxu0 %v419
      %448 = vmatprep.subr.mxu0 %v422
      %449 = vmatpush1.msra.mxu0 %v421
      %450 = vmatprep.subr.mxu0 %v440
      %451 = vmatpush1.msra.mxu0 %v437
      %452 = vmatprep.subr.mxu0 0.0
      %453 = vmatpush1.msra.mxu0 0.0
      %454 = vmatprep.subr.mxu0 0.0
      %455 = vmatpush1.msra.mxu0 0.0
      %456 = vmatprep.subr.mxu0 0.0
      %457 = vmatpush1.msra.mxu0 0.0
      %458 = vmatprep.subr.mxu0 0.0
      %459 = vmatpush1.msra.mxu0 0.0
      %460 = vmatprep.subr.mxu0 0.0
      %461 = vmatpush1.msra.mxu0 0.0
      %462 = vmatprep.subr.mxu0 0.0
      %463 = vmatpush1.msra.mxu0 0.0
      %464 = vmatprep.subr.mxu0 0.0
      %465 = vmatpush1.msra.mxu0 0.0
      %466 = vmatprep.subr.mxu0 0.0
      %467 = vmatpush1.msra.mxu0 0.0
      %468 = vmatprep.subr.mxu0 0.0
      %469 = vmatpush1.msra.mxu0 0.0
      %470 = vmatprep.subr.mxu0 0.0
      %471 = vmatpush1.msra.mxu0 0.0
      %472 = vmatprep.subr.mxu0 0.0
      %473 = vmatpush1.msra.mxu0 0.0
      %474 = vmatprep.subr.mxu0 0.0
      %475 = vmatpush1.msra.mxu0 0.0
      %476 = vmatprep.subr.mxu0 0.0
      %477 = vmatpush1.msra.mxu0 0.0
      %478 = vmatprep.subr.mxu0 0.0
      %479 = vmatpush1.msra.mxu0 0.0
      %480 = vmatprep.subr.mxu0 0.0
      %481 = vmatpush1.msra.mxu0 0.0
      %482 = vmatprep.subr.mxu0 0.0
      %483 = vmatpush1.msra.mxu0 0.0
      %484 = vmatprep.subr.mxu0 0.0
      %485 = vmatpush1.msra.mxu0 0.0
      %486 = vmatprep.subr.mxu0 0.0
      %487 = vmatpush1.msra.mxu0 0.0
      %488 = vmatprep.subr.mxu0 0.0
      %489 = vmatpush1.msra.mxu0 0.0
      %490 = vmatprep.subr.mxu0 0.0
      %491 = vmatpush1.msra.mxu0 0.0
      %492 = vmatprep.subr.mxu0 0.0
      %493 = vmatpush1.msra.mxu0 0.0
      %494 = vmatprep.subr.mxu0 0.0
      %495 = vmatpush1.msra.mxu0 0.0
      %496 = vmatprep.subr.mxu0 0.0
      %497 = vmatpush1.msra.mxu0 0.0
      %498 = vmatprep.subr.mxu0 0.0
      %499 = vmatpush1.msra.mxu0 0.0
      %500 = vmatprep.subr.mxu0 0.0
      %501 = vmatpush1.msra.mxu0 0.0
      %502 = vmatprep.subr.mxu0 0.0
      %503 = vmatpush1.msra.mxu0 0.0
      %504 = vmatprep.subr.mxu0 0.0
      %505 = vmatpush1.msra.mxu0 0.0
      %506 = vmatprep.mubr.f32.mxu0 0.0
      %507 = vmatmul.mubr.f32.gmra.mrb[0].mxu0 %v433
      %v508 = vpop.f32.mrb[0].mxu0
      %v509 = vadd.f32 %v429, %v508
      %v510 = vpop.f32.mrb[0].mxu0
      %v511 = vadd.f32 %v429, %v510
      %512 = vdwg.mxu0
      %v513 = vmax.f32 %v509, 0.0
      %v514 = vmax.f32 %v511, 0.0
      %v515 = vld [vmem:[%s234] sm:$0xff]
      %v517 = vcombine.high %v515, %v515
      %v519 = vadd.f32 %v513, %v515
      %v520 = vadd.f32 %v514, %v517
      %v523 = vcombine.low %v519, %v520
      %525 = vst [vmem:[%s244] sm:$0xff] %v523
      %p526 = scmp.lt.s32.totalorder %s16, 1
      %s527 = scalar_select %p526, %s16, 1
      %s528 = smul.addr %s527, 2
      %s529 = smul.addr %s528, 4
      %s530 = scalar_lea.vmem %s5, %s529
      // Predicated region
      $region41: #{node_forward.1} parent=39 // pred_check
        %p531 = pneg %p149
      $region42: #{node_forward.1} parent=39 // pred_check_branch
        %533 = sbr.rel (%p531) target = $region44
      $region43: #{node_forward.1} parent=39 // pred_region
        _
      $region44: #{node_forward.1} parent=39 // pred_fallthru
        _
    $region40: #{node_forward.1} parent=5 // pred_fallthru
      _
    %p534 = scmp.le.s32.totalorder 2, %s11
    // Predicated region
    $region45: #{node_forward.1} parent=5 // pred_check
      %p535 = pneg %p534
    $region46: #{node_forward.1} parent=5 // pred_check_branch
      %537 = sbr.rel (%p535) target = $region48
    $region47: #{node_forward.1} parent=5 // pred_region
      %s538 = ssub.s32 %s11, 2
      // Predicated region
      $region49: #{node_forward.1} parent=47 // pred_check
        %p539 = pneg %p155
      $region50: #{node_forward.1} parent=47 // pred_check_branch
        %541 = sbr.rel (%p539) target = $region52
      $region51: #{node_forward.1} parent=47 // pred_region
        %p542 = scmp.lt.s32.totalorder %s17, 1
        %s543 = scalar_select %p542, %s17, 1
        %s544 = smul.addr %s543, 2
        %s545 = smul.addr %s544, 4
        %s546 = scalar_lea.vmem %s5, %s545
      $region52: #{node_forward.1} parent=47 // pred_fallthru
        _
    $region48: #{node_forward.1} parent=5 // pred_fallthru
      _
  $region6: #{node_forward.1} parent=0 // loop_footer
    %s15 = sadd.s32 1, %s11
  $region7: #{node_forward.1} parent=0 // loop_footer_branch
    %10 = sbr.rel target = $region3
  $region8: #{node_forward.1} parent=0 // loop_exit
    _

</llo_original>
